<compile_context>
chip_gen: v7x
topology: tpu7x:2x2x1
jax: 0.10.0
libtpu: 0.0.40
codegen_flags: <defaults>
</compile_context>

<pallas_src>
import jax
import jax.numpy as jnp
from jax.experimental import pallas as pl
from jax.experimental.pallas import tpu as pltpu

_LANE = 128  # vreg lane width


def _packed_sublanes(dtype) -> int:
    """Native packed sublane count: f32 -> 8, bf16/f16 -> 16, int8/fp8 -> 32."""
    itemsize = jnp.dtype(dtype).itemsize
    return max(8, 32 // max(1, itemsize))


def _tpu_plan():
    """Generation-aware (block_bytes_per_buffer, vmem_limit_bytes)."""
    try:
        kind = jax.devices()[0].device_kind.lower()
    except Exception:  # pragma: no cover - defensive; fall through to default
        kind = ""
    if "v5 lite" in kind or "v5e" in kind or "v5litepod" in kind:
        # Default scoped limit is 16 MiB; 4 double-buffered 2 MiB buffers = 8 MiB.
        return 2 * 1024 * 1024, None
    if "v6" in kind or "trillium" in kind:
        # 128 MiB physical VMEM: 8 MiB/buffer, raise scoped limit to 64 MiB.
        return 8 * 1024 * 1024, 64 << 20
    if "v7" in kind:
        # Only 64 MiB physical VMEM: cap at 4 MiB/buffer, 32 MiB scoped limit.
        # TODO(synk): verify in an xprof trace that the "parallel" grid axis
        # shards row blocks across both v7x TensorCores; if not, switch to
        # pltpu.CORE_PARALLEL.  Also sweep pipeline_mode=pl.Buffered(3).
        return 4 * 1024 * 1024, 32 << 20
    return 2 * 1024 * 1024, None  # conservative default for unknown parts


def _copy_kernel(x_ref, o_ref):
    # Trivial elementwise hot path: identity copy of the current tile.
    o_ref[...] = x_ref[...]


def _lane_dense_copy(x2d: jnp.ndarray, *, sublanes: int) -> jnp.ndarray:
    """Identity copy of a (rows, lanes) lane-dense slab with large row blocks."""
    rows, lanes = x2d.shape
    block_bytes, vmem_limit = _tpu_plan()
    itemsize = jnp.dtype(x2d.dtype).itemsize

    max_rows = max(sublanes, block_bytes // (lanes * itemsize))
    block_rows = min(rows, max_rows)
    if block_rows < rows:
        # Keep dtype-aware packed-sublane alignment for non-full-extent blocks.
        block_rows = max(sublanes, block_rows - (block_rows % sublanes))
    grid = (pl.cdiv(rows, block_rows),)
    nbytes = rows * lanes * itemsize

    return pl.pallas_call(
        _copy_kernel,
        out_shape=jax.ShapeDtypeStruct((rows, lanes), x2d.dtype),
        grid=grid,
        in_specs=[pl.BlockSpec((block_rows, lanes), lambda i: (i, 0))],
        out_specs=pl.BlockSpec((block_rows, lanes), lambda i: (i, 0)),
        compiler_params=pltpu.CompilerParams(
            dimension_semantics=("parallel",),
            vmem_limit_bytes=vmem_limit,
        ),
        cost_estimate=pl.CostEstimate(
            flops=0, transcendentals=0, bytes_accessed=2 * nbytes),
    )(x2d)


def _lane_width(total: int):
    """Widest lane extent (multiple of 128) that divides `total`, else None."""
    for w in (1024, 512, 256, _LANE):
        if total % w == 0:
            return w
    return None


def _tiled_vmem_copy(images: jnp.ndarray) -> jnp.ndarray:
    """Lane-dense, large-block, pipelined VMEM round-trip identity copy."""
    orig_shape = images.shape
    total = images.size
    sublanes = _packed_sublanes(images.dtype)

    lanes = _lane_width(total)
    if lanes is not None:
        x2d = images.reshape(total // lanes, lanes)
        return _lane_dense_copy(x2d, sublanes=sublanes).reshape(orig_shape)

    # Fallback for non-lane-divisible totals: pad the flattened array to a
    # multiple of (sublanes * 1024) so the same wide-lane, full-vreg kernel
    # applies (no masked lane-sparse stores, no whole-array VMEM block), then
    # slice back to the original size.
    lanes = 1024
    quantum = sublanes * lanes
    flat = images.reshape(total)
    pad_to = ((total + quantum - 1) // quantum) * quantum
    padded = jnp.pad(flat, (0, pad_to - total))
    out = _lane_dense_copy(padded.reshape(pad_to // lanes, lanes),
                           sublanes=sublanes)
    return out.reshape(pad_to)[:total].reshape(orig_shape)


def _hbm_dma_kernel(x_hbm, o_hbm, sem):
    # Pure HBM->HBM copy: one DMA descriptor, no VMEM round trip, no vld/vst.
    # TODO(synk): for very large arrays, chunk with 2 semaphores in a pl.loop
    # to overlap descriptor issue latency with in-flight transfers.
    cp = pltpu.make_async_copy(x_hbm, o_hbm, sem)
    cp.start()
    cp.wait()


def _hbm_dma_copy(images: jnp.ndarray) -> jnp.ndarray:
    nbytes = images.size * jnp.dtype(images.dtype).itemsize
    return pl.pallas_call(
        _hbm_dma_kernel,
        out_shape=jax.ShapeDtypeStruct(images.shape, images.dtype),
        in_specs=[pl.BlockSpec(memory_space=pl.ANY)],
        out_specs=pl.BlockSpec(memory_space=pl.ANY),
        scratch_shapes=[pltpu.SemaphoreType.DMA],
        cost_estimate=pl.CostEstimate(
            flops=0, transcendentals=0, bytes_accessed=2 * nbytes),
    )(images)


def inpainter_forward(images: jnp.ndarray, mask: jnp.ndarray, *,
                      materialize: bool = False, method: str = "dma",
                      **kwargs):
    """Pallas implementation of Inpainter.forward (base class = identity).

    Args:
        images: (N, C, H, W) input images.
        mask:   (N, 1, H, W) inpainting mask (unused by the base inpainter,
                kept for API parity).
        materialize: if False (default, fastest), return the input array
                directly — zero bytes moved.  If True, produce a distinct
                output buffer; note no kernel can beat the 2*bytes/HBM_BW
                floor for that case.
        method: "dma"  -> pure HBM->HBM DMA copy (default materialize path),
                "vmem" -> lane-dense tiled BlockSpec copy through VMEM.

    Returns:
        dict with 'pred_images': (N, C, H, W), same dtype as images.
    """
    del mask, kwargs  # Base Inpainter ignores the mask and extra kwargs.

    if not materialize:
        # Fastest possible identity: no kernel launch, no HBM read/write.
        return {"pred_images": images}

    if method == "dma":
        pred = _hbm_dma_copy(images)
    else:
        pred = _tiled_vmem_copy(images)
    return {"pred_images": pred}


if __name__ == "__main__":
    key = jax.random.PRNGKey(0)
    k_img, k_mask = jax.random.split(key)

    # Small shapes consistent with the module's forward signature.
    images = jax.random.normal(k_img, (2, 4, 16, 16), dtype=jnp.float32)
    mask = (jax.random.uniform(k_mask, (2, 1, 16, 16)) > 0.5).astype(jnp.float32)

    # Default (fast) identity path: no kernel, no data movement.
    out_fast = inpainter_forward(images, mask)
    assert out_fast["pred_images"] is images

    # Pure HBM->HBM DMA materialize path.
    out_dma = inpainter_forward(images, mask, materialize=True, method="dma")
    pred_dma = jax.block_until_ready(out_dma["pred_images"])
    assert pred_dma.shape == images.shape
    assert pred_dma.dtype == images.dtype
    assert bool(jnp.all(pred_dma == images))

    # Lane-dense tiled VMEM copy path (lane width 1024 here: 2048 % 1024 == 0).
    out_vmem = inpainter_forward(images, mask, materialize=True, method="vmem")
    pred_vmem = jax.block_until_ready(out_vmem["pred_images"])
    assert pred_vmem.shape == images.shape
    assert pred_vmem.dtype == images.dtype
    assert bool(jnp.all(pred_vmem == images))

    # Non-128-divisible total exercises the padded fallback (pads to a full
    # (sublanes x 1024) slab, copies, slices back) — no un-tiled VMEM block.
    odd = jax.random.normal(key, (2, 3, 5, 7), dtype=jnp.float32)
    odd_mask = jnp.ones((2, 1, 5, 7), dtype=jnp.float32)
    out_odd = inpainter_forward(odd, odd_mask, materialize=True, method="vmem")
    pred_odd = jax.block_until_ready(out_odd["pred_images"])
    assert pred_odd.shape == odd.shape
    assert bool(jnp.all(pred_odd == odd))

    print("KERNEL_OK")
</pallas_src>

<mosaic_0001>
module attributes {stable_mosaic.version = 11 : i64} {
  func.func @_hbm_dma_kernel(%arg0: memref<2x4x16x16xf32, #tpu.memory_space<any>>, %arg1: memref<2x4x16x16xf32, #tpu.memory_space<any>>, %arg2: memref<!tpu.dma_semaphore, #tpu.memory_space<semaphore_mem>>) attributes {dimension_semantics = [], scalar_prefetch = 0 : i64, scratch_operands = 1 : i64, tpu.core_type = #tpu.core_type<tc>} {
    tpu.enqueue_dma source(%arg0 : memref<2x4x16x16xf32, #tpu.memory_space<any>>) target(%arg1 : memref<2x4x16x16xf32, #tpu.memory_space<any>>) target_semaphore(%arg2 : memref<!tpu.dma_semaphore, #tpu.memory_space<semaphore_mem>>)
    tpu.wait_dma2 semaphore(%arg2 : memref<!tpu.dma_semaphore, #tpu.memory_space<semaphore_mem>>) src(%arg0 : memref<2x4x16x16xf32, #tpu.memory_space<any>>) dst(%arg1 : memref<2x4x16x16xf32, #tpu.memory_space<any>>)
    return
  }
}

</mosaic_0001>

<llo_original>
// kernel: tpu_custom_call.1
$region0: #{tpu_custom_call.1}
  #allocation0 [shape = 'u32[]', space=smem, size = 0x4, offset = 0x4, fixed_abs, tag = 'smem constant byte address 0x4 - core index']
  #allocation1 [shape = 'u32[144,128]{1,0:T(1,128)}', space=vmem, size = 0x12000, scoped, tag = 'internal scratch']
  #allocation2 [shape = 's32[1]{0}', space=sflag, size = 0x4, scoped, tag = 'scratch operand']
  #allocation3 [shape = 's32[]', space=sflag, size = 0x4, offset = 0, fixed_abs, tag = 'sflag constant byte address 0x0 - dummy sync flag']
  #allocation4 [shape = 'u32[0]{0}', space=smem, size = 0, offset = 0, fixed_abs, tag = 'smem constant byte address 0x0 - null']
  %s0 = inlined_call_operand.hbm [shape: f32[2,4,16,16], index: 0, kind: input, shape index: {}]
  %s1 = inlined_call_operand.hbm [shape: f32[2,4,16,16], index: 1, kind: output, shape index: {}]
  %s2 = sld [smem:[#allocation0]]
  $region2: #{tpu_custom_call.1} parent=0
    _
  %s4 = ssub.s32 1, %s2
  %s5 = scalar_select 0, %s4, %s2
  %s7 = sshll.u32 1, 14
  %s8 = sxor.u32 4294967295, %s7
  %s11 = sshll.u32 3, 24
  %s12 = sxor.u32 4294967295, %s11
  %s13 = sand.u32 0, %s12
  %s15 = sor.u32 %s13, 0
  %18 = dma.general %s0, 2048, %s1, [#allocation2], [#allocation3], [#allocation4], %s15, 0
  %s19 = smul.u32 2, 4
  %s20 = smul.u32 %s19, 16
  %s21 = smul.u32 %s20, 1
  %s22 = sshll.u32 %s21, 4
  %23 = dma.done [#allocation2], %s22
  %24 = vsyncmov [#allocation2]
  %s25 = vpop.sfrf %24
  %p26 = scmp.eq.s32.totalorder %s25, 0
  %p27 = pneg %p26
  %29 = shalt.err (%p27)

</llo_original>
